<compile_context>
chip_gen: v7x
topology: tpu7x:2x2x1
jax: 0.10.0
libtpu: 0.0.40
codegen_flags: <defaults>
</compile_context>

<pallas_src>
import functools
import math

import jax
import jax.numpy as jnp
from jax import lax
from jax.experimental import pallas as pl
from jax.experimental.pallas import tpu as pltpu

_LANE = 128
_BN_EPS = 1e-5  # nn.BatchNorm2d default


def _round_up(x, m):
    return ((x + m - 1) // m) * m


# ----------------------------------------------------------------------------
# Pallas kernel: fused GEMM + per-column scale/bias + (optional) SiLU epilogue
# ----------------------------------------------------------------------------
def _gemm_scale_bias_act_kernel(x_ref, w_ref, s_ref, b_ref, o_ref, *, act):
    """o = act(scale * (x @ w) + bias).  x:(TM,Kp) bf16, w:(Kp,Cp) bf16."""
    acc = jnp.dot(x_ref[...], w_ref[...], preferred_element_type=jnp.float32)
    acc = acc * s_ref[...] + b_ref[...]
    if act == "silu":
        # x * sigmoid(x); reciprocal routed to the (otherwise idle) EUP slot.
        acc = acc * pl.reciprocal(1.0 + jnp.exp(-acc), approx=True)
    o_ref[...] = acc.astype(o_ref.dtype)


def _choose_tm(m, tm_max=512, tm_min=128, min_steps=8):
    """Largest M tile <= tm_max that still yields >= min_steps grid steps
    (so both v7x TensorCores get pipelined work); always a multiple of 8."""
    tm = min(tm_max, _round_up(m, 8))
    while tm > tm_min and pl.cdiv(m, tm) < min_steps:
        tm = max(tm_min, _round_up(tm // 2, 8))
    return tm


def gemm_scale_bias_act(x, w, scale, bias, *, act="none",
                        out_dtype=jnp.float32, tm_max=512):
    """out = act(scale * (x @ w) + bias), tiled over M with a parallel 1-D grid.

    Caller pre-pads: Kp (contraction) to the compute-dtype sublane multiple and
    Cp (output channels) to a multiple of 128 (lane-dense, unmasked stores).
    Weight padding is one-time; activation padding fuses into its producer.
    """
    M, Kp = x.shape
    Kw, Cp = w.shape
    assert Kw == Kp and Cp % _LANE == 0, (x.shape, w.shape)

    tm = _choose_tm(M, tm_max=tm_max)
    grid = (pl.cdiv(M, tm),)

    isz = lambda a: jnp.dtype(a.dtype).itemsize
    flops = 2 * M * Kp * Cp
    transcendentals = M * Cp if act == "silu" else 0
    bytes_accessed = int(x.size * isz(x) + w.size * isz(w)
                         + (scale.size + bias.size) * 4
                         + M * Cp * jnp.dtype(out_dtype).itemsize)

    # Double-buffered footprint: streamed x block + resident w/scale/bias +
    # output block.  Never below the 32 MiB scoped default, never above v7x's
    # 64 MiB physical VMEM per TensorCore.
    footprint = (2 * tm * Kp * isz(x) + 2 * Kp * Cp * isz(w) + 4 * Cp * 4
                 + 2 * tm * Cp * jnp.dtype(out_dtype).itemsize)
    vmem_limit = int(min(64 * 2**20, max(32 * 2**20, 2 * footprint)))

    # TODO(synk): add pipeline_mode=pl.Buffered(1) on the invariant w/scale/bias
    #             blocks (and a K grid axis + f32 accumulator) once a large Cin
    #             makes the resident weight footprint matter on v7x's 64 MiB VMEM.
    return pl.pallas_call(
        functools.partial(_gemm_scale_bias_act_kernel, act=act),
        grid=grid,
        out_shape=jax.ShapeDtypeStruct((M, Cp), out_dtype),
        in_specs=[
            pl.BlockSpec((tm, Kp), lambda i: (i, 0)),   # streamed activations
            pl.BlockSpec((Kp, Cp), lambda i: (0, 0)),   # resident weights
            pl.BlockSpec((1, Cp), lambda i: (0, 0)),    # folded BN scale
            pl.BlockSpec((1, Cp), lambda i: (0, 0)),    # folded bias
        ],
        out_specs=pl.BlockSpec((tm, Cp), lambda i: (i, 0)),
        compiler_params=pltpu.CompilerParams(
            dimension_semantics=("parallel",),
            vmem_limit_bytes=vmem_limit),
        cost_estimate=pl.CostEstimate(flops=flops,
                                      transcendentals=transcendentals,
                                      bytes_accessed=bytes_accessed),
    )(x, w, scale, bias)


# ----------------------------------------------------------------------------
# Plain-JAX glue: deformable bilinear im2col (data-dependent gather)
# ----------------------------------------------------------------------------
def _deform_im2col(x, offs, msk, kh, kw, stride, pad, dil, *, k_pad_to,
                   out_dtype=jnp.bfloat16):
    """Modulated deformable im2col (torchvision deform_conv2d semantics).

    Emits bf16 columns with the contraction dim already zero-padded to
    `k_pad_to`, so the Pallas GEMM consumes them directly (no extra cast pass).
    x:(N,H,W,Cin)  offs:(N,Ho,Wo,2K)  msk:(N,Ho,Wo,K) (sigmoid already applied)
    -> cols:(N*Ho*Wo, k_pad_to) with (tap slow, cin fast).
    """
    N, H, W, Cin = x.shape
    _, Ho, Wo, K = msk.shape

    ki = jnp.arange(kh)
    kj = jnp.arange(kw)
    ho = jnp.arange(Ho)
    wo = jnp.arange(Wo)
    base_y = jnp.broadcast_to(
        ho[:, None, None] * stride - pad + ki[None, :, None] * dil,
        (Ho, kh, kw)).reshape(Ho, K)
    base_x = jnp.broadcast_to(
        wo[:, None, None] * stride - pad + kj[None, None, :] * dil,
        (Wo, kh, kw)).reshape(Wo, K)

    o = offs.reshape(N, Ho, Wo, K, 2)
    py = o[..., 0] + base_y[None, :, None, :].astype(jnp.float32)  # (N,Ho,Wo,K)
    px = o[..., 1] + base_x[None, None, :, :].astype(jnp.float32)

    y0 = jnp.floor(py)
    x0 = jnp.floor(px)
    ly = py - y0
    lx = px - x0
    y0i = y0.astype(jnp.int32)
    x0i = x0.astype(jnp.int32)
    b_idx = jnp.arange(N)[:, None, None, None]

    def corner(yi, xi, wgt):
        valid = (yi >= 0) & (yi < H) & (xi >= 0) & (xi < W)
        yc = jnp.clip(yi, 0, H - 1)
        xc = jnp.clip(xi, 0, W - 1)
        v = x[b_idx, yc, xc, :]                        # (N,Ho,Wo,K,Cin) gather
        return v * jnp.where(valid, wgt, 0.0)[..., None]

    val = (corner(y0i, x0i, (1.0 - ly) * (1.0 - lx))
           + corner(y0i, x0i + 1, (1.0 - ly) * lx)
           + corner(y0i + 1, x0i, ly * (1.0 - lx))
           + corner(y0i + 1, x0i + 1, ly * lx))
    val = val * msk[..., None]                          # modulation
    cols = val.astype(out_dtype).reshape(N * Ho * Wo, K * Cin)
    if k_pad_to != K * Cin:
        cols = jnp.pad(cols, ((0, 0), (0, k_pad_to - K * Cin)))
    return cols


# ----------------------------------------------------------------------------
# One-time parameter preparation (hoisted out of the forward pass)
# ----------------------------------------------------------------------------
def prepare_dcnv2_params(params, *, kh, kw, cin, compute_dtype=jnp.bfloat16):
    """Flatten/transpose weights, fold BN, zero-pad K and Cout, cast to bf16."""
    K = kh * kw
    cout = params["bias"].shape[0]
    kc = K * cin
    sub = 16 if jnp.dtype(compute_dtype) == jnp.dtype(jnp.bfloat16) else 8
    kp = _round_up(kc, sub)           # contraction dim -> sublane multiple
    cp = _round_up(cout, _LANE)       # output channels -> lane-dense

    w_mat = jnp.transpose(params["w_oihw"], (2, 3, 1, 0)).reshape(kc, cout)
    w_mat = jnp.pad(w_mat, ((0, kp - kc), (0, cp - cout))).astype(compute_dtype)

    scale = params["gamma"] * lax.rsqrt(params["var"] + _BN_EPS)
    fused_bias = (params["bias"] - params["mean"]) * scale + params["beta"]
    scale_p = jnp.pad(scale, (0, cp - cout)).reshape(1, cp).astype(jnp.float32)
    bias_p = jnp.pad(fused_bias, (0, cp - cout)).reshape(1, cp).astype(jnp.float32)

    return {
        "om_w_hwio": params["om_w_hwio"].astype(jnp.float32),
        "om_b": params["om_b"].astype(jnp.float32),
        "w_mat": w_mat, "scale": scale_p, "bias": bias_p,
    }


# ----------------------------------------------------------------------------
# DCNv2 forward (native conv for offsets + JAX gather glue + Pallas fused GEMM)
# ----------------------------------------------------------------------------
@functools.partial(jax.jit,
                   static_argnames=("kh", "kw", "stride", "pad", "dil", "cout"))
def dcnv2_forward(prep, x_nhwc, *, kh, kw, stride, pad, dil, cout):
    N, H, W, Cin = x_nhwc.shape
    K = kh * kw
    Kp, Cp = prep["w_mat"].shape

    # 1) offset/mask conv (Conv2d, same k/s/p, dilation=1): native XLA conv —
    #    avoids the 9x im2col blow-up; nothing to fuse in its epilogue.
    om = lax.conv_general_dilated(
        x_nhwc, prep["om_w_hwio"], (stride, stride),
        [(pad, pad), (pad, pad)],
        dimension_numbers=("NHWC", "HWIO", "NHWC")) + prep["om_b"]
    _, Ho, Wo, _ = om.shape

    # chunk into (o1, o2, mask); offset = cat(o1, o2); mask = sigmoid(mask)
    offs = jnp.concatenate([om[..., :K], om[..., K:2 * K]], axis=-1)
    msk = jax.nn.sigmoid(om[..., 2 * K:])

    # 2) deformable bilinear im2col — bf16 columns, contraction dim pre-padded.
    # TODO(synk): fuse this data-dependent gather into the Pallas kernel (DMA
    #             the (H,W,Cin) window into a VMEM scratch + in-kernel indexing).
    cols = _deform_im2col(x_nhwc, offs, msk, kh, kw, stride, pad, dil,
                          k_pad_to=Kp)

    # 3) main GEMM + conv bias + folded BN + SiLU — Pallas, bf16 MXU, f32 acc.
    out_p = gemm_scale_bias_act(cols, prep["w_mat"], prep["scale"],
                                prep["bias"], act="silu")
    # carry the lane padding through the reshape; single de-pad slice at the end
    return out_p.reshape(N, Ho, Wo, Cp)[..., :cout]


# ----------------------------------------------------------------------------
# Pure-JAX reference (per-tap bilinear sampling + einsum) for validation
# ----------------------------------------------------------------------------
def _bilinear_sample(x, py, px):
    N, H, W, C = x.shape
    y0 = jnp.floor(py).astype(jnp.int32)
    x0 = jnp.floor(px).astype(jnp.int32)
    ly = py - y0
    lx = px - x0
    b = jnp.arange(N)[:, None, None]

    def corner(yi, xi, wgt):
        valid = (yi >= 0) & (yi < H) & (xi >= 0) & (xi < W)
        v = x[b, jnp.clip(yi, 0, H - 1), jnp.clip(xi, 0, W - 1), :]
        return v * jnp.where(valid, wgt, 0.0)[..., None]

    return (corner(y0, x0, (1.0 - ly) * (1.0 - lx))
            + corner(y0, x0 + 1, (1.0 - ly) * lx)
            + corner(y0 + 1, x0, ly * (1.0 - lx))
            + corner(y0 + 1, x0 + 1, ly * lx))


def dcnv2_reference(params, x_nhwc, *, kh, kw, stride, pad, dil):
    N, H, W, Cin = x_nhwc.shape
    K = kh * kw
    Cout = params["bias"].shape[0]

    om = lax.conv_general_dilated(
        x_nhwc, params["om_w_hwio"], (stride, stride),
        [(pad, pad), (pad, pad)],
        dimension_numbers=("NHWC", "HWIO", "NHWC")) + params["om_b"]
    _, Ho, Wo, _ = om.shape
    offs = jnp.concatenate([om[..., :K], om[..., K:2 * K]], axis=-1)
    msk = jax.nn.sigmoid(om[..., 2 * K:])

    ho = jnp.arange(Ho, dtype=jnp.float32)[None, :, None]
    wo = jnp.arange(Wo, dtype=jnp.float32)[None, None, :]
    acc = jnp.zeros((N, Ho, Wo, Cout), jnp.float32)
    for i in range(kh):
        for j in range(kw):
            k = i * kw + j
            py = ho * stride - pad + i * dil + offs[..., 2 * k]
            px = wo * stride - pad + j * dil + offs[..., 2 * k + 1]
            samp = _bilinear_sample(x_nhwc, py, px) * msk[..., k][..., None]
            w_tap = params["w_oihw"][:, :, i, j]  # (Cout, Cin)
            # match the kernel's bf16 MXU inputs (f32 accumulation)
            samp_b = samp.astype(jnp.bfloat16).astype(jnp.float32)
            w_b = w_tap.astype(jnp.bfloat16).astype(jnp.float32)
            acc = acc + jnp.einsum("nhwc,oc->nhwo", samp_b, w_b)

    y = acc + params["bias"]
    scale = params["gamma"] / jnp.sqrt(params["var"] + _BN_EPS)
    y = (y - params["mean"]) * scale + params["beta"]
    return y * jax.nn.sigmoid(y)


# ----------------------------------------------------------------------------
# Deterministic synthetic parameters
# ----------------------------------------------------------------------------
def make_dcnv2_params(key, cin, cout, k, dg=1):
    ks = jax.random.split(key, 8)
    std = 1.0 / math.sqrt(cin * k * k)
    w_oihw = jax.random.uniform(ks[0], (cout, cin, k, k), jnp.float32, -std, std)
    bias = 0.1 * jax.random.normal(ks[1], (cout,), jnp.float32)
    c_om = dg * 3 * k * k
    # NOTE: reset_parameters() zero-inits conv_offset_mask (degenerating DCNv2 to
    # a plain conv with mask=0.5); small random values are used here so the
    # deformable bilinear-sampling path is actually exercised.
    om_w_oihw = 0.1 * jax.random.normal(ks[2], (c_om, cin, k, k), jnp.float32)
    om_b = 0.1 * jax.random.normal(ks[3], (c_om,), jnp.float32)
    gamma = 1.0 + 0.1 * jax.random.normal(ks[4], (cout,), jnp.float32)
    beta = 0.1 * jax.random.normal(ks[5], (cout,), jnp.float32)
    mean = 0.1 * jax.random.normal(ks[6], (cout,), jnp.float32)
    var = 0.5 + jax.random.uniform(ks[7], (cout,), jnp.float32)
    return {
        "w_oihw": w_oihw, "bias": bias,
        "om_w_hwio": jnp.transpose(om_w_oihw, (2, 3, 1, 0)), "om_b": om_b,
        "gamma": gamma, "beta": beta, "mean": mean, "var": var,
    }


if __name__ == "__main__":
    # DCNv2(in_channels=4, out_channels=16, kernel_size=3, stride=1, padding=1)
    N, Cin, H, W = 2, 4, 16, 16
    Cout, k, stride, pad, dil, groups, dg = 16, 3, 1, 1, 1, 1, 1
    assert groups == 1 and dg == 1  # TODO(synk): general groups/deformable_groups

    key = jax.random.PRNGKey(0)
    kx, kp = jax.random.split(key)
    x_nchw = jax.random.normal(kx, (N, Cin, H, W), jnp.float32)  # PyTorch layout
    x_nhwc = jnp.transpose(x_nchw, (0, 2, 3, 1))                 # kernel layout
    params = make_dcnv2_params(kp, Cin, Cout, k, dg)
    prep = prepare_dcnv2_params(params, kh=k, kw=k, cin=Cin)     # one-time prep

    out = dcnv2_forward(prep, x_nhwc, kh=k, kw=k, stride=stride, pad=pad,
                        dil=dil, cout=Cout)
    out = jax.block_until_ready(out)

    # PyTorch output would be (N, Cout, H, W); ours is the NHWC transpose.
    assert out.shape == (N, H, W, Cout), out.shape

    ref = jax.block_until_ready(
        dcnv2_reference(params, x_nhwc, kh=k, kw=k, stride=stride, pad=pad,
                        dil=dil))
    max_err = float(jnp.max(jnp.abs(out - ref)))
    if not bool(jnp.allclose(out, ref, atol=5e-3, rtol=5e-3)):
        raise AssertionError(
            f"Pallas DCNv2 output mismatches JAX reference (max abs err {max_err})")

    print("KERNEL_OK")
</pallas_src>

<mosaic_0001>
module attributes {stable_mosaic.version = 11 : i64} {
  func.func @_gemm_scale_bias_act_kernel(%arg0: i32, %arg1: memref<128x48xbf16, #tpu.memory_space<vmem>>, %arg2: memref<48x128xbf16, #tpu.memory_space<vmem>>, %arg3: memref<1x128xf32, #tpu.memory_space<vmem>>, %arg4: memref<1x128xf32, #tpu.memory_space<vmem>>, %arg5: memref<128x128xf32, #tpu.memory_space<vmem>>) attributes {dimension_semantics = [#tpu.dimension_semantics<parallel>], iteration_bounds = array<i64: 4>, scalar_prefetch = 0 : i64, scratch_operands = 0 : i64, tpu.core_type = #tpu.core_type<tc>, window_params = [{transform_indices = @transform_0, window_bounds = array<i64: 128, 48>}, {pipeline_mode = #tpu.pipeline_mode<synchronous>, transform_indices = @transform_1, window_bounds = array<i64: 48, 128>}, {pipeline_mode = #tpu.pipeline_mode<synchronous>, transform_indices = @transform_2, window_bounds = array<i64: 1, 128>}, {pipeline_mode = #tpu.pipeline_mode<synchronous>, transform_indices = @transform_3, window_bounds = array<i64: 1, 128>}, {transform_indices = @transform_4, window_bounds = array<i64: 128, 128>}]} {
    %c0 = arith.constant 0 : index
    %c0_0 = arith.constant 0 : index
    %0 = vector.load %arg1[%c0, %c0_0] : memref<128x48xbf16, #tpu.memory_space<vmem>>, vector<128x48xbf16>
    %c0_1 = arith.constant 0 : index
    %c0_2 = arith.constant 0 : index
    %1 = vector.load %arg2[%c0_1, %c0_2] : memref<48x128xbf16, #tpu.memory_space<vmem>>, vector<48x128xbf16>
    %cst = arith.constant dense<0.000000e+00> : vector<128x128xf32>
    %2 = tpu.matmul %0, %1, %cst {dimension_numbers = #tpu.dot_dimension_numbers<[1], [0], [0], [1], [0, 0, 1, 1], [], []>} : vector<128x48xbf16>, vector<48x128xbf16>, vector<128x128xf32> -> vector<128x128xf32>
    %c0_3 = arith.constant 0 : index
    %c0_4 = arith.constant 0 : index
    %3 = vector.load %arg3[%c0_3, %c0_4] : memref<1x128xf32, #tpu.memory_space<vmem>>, vector<1x128xf32>
    %4 = vector.broadcast %3 : vector<1x128xf32> to vector<128x128xf32>
    %5 = arith.mulf %2, %4 : vector<128x128xf32>
    %c0_5 = arith.constant 0 : index
    %c0_6 = arith.constant 0 : index
    %6 = vector.load %arg4[%c0_5, %c0_6] : memref<1x128xf32, #tpu.memory_space<vmem>>, vector<1x128xf32>
    %7 = vector.broadcast %6 : vector<1x128xf32> to vector<128x128xf32>
    %8 = arith.addf %5, %7 : vector<128x128xf32>
    %cst_7 = arith.constant 0.000000e+00 : f32
    %9 = vector.broadcast %cst_7 : f32 to vector<128x128xf32>
    %10 = arith.subf %9, %8 : vector<128x128xf32>
    %11 = math.exp %10 : vector<128x128xf32>
    %cst_8 = arith.constant 1.000000e+00 : f32
    %12 = vector.broadcast %cst_8 : f32 to vector<128x128xf32>
    %13 = arith.addf %12, %11 : vector<128x128xf32>
    %14 = tpu.reciprocal %13 {approx = true} : vector<128x128xf32> -> vector<128x128xf32>
    %15 = arith.mulf %8, %14 : vector<128x128xf32>
    %c0_9 = arith.constant 0 : index
    %c0_10 = arith.constant 0 : index
    %16 = vector.load %arg5[%c0_9, %c0_10] : memref<128x128xf32, #tpu.memory_space<vmem>>, vector<128x128xf32>
    tpu.vector_store %arg5[%c0_9, %c0_10], %15 {strides = array<i32>} : memref<128x128xf32, #tpu.memory_space<vmem>>, vector<128x128xf32>,
    return
  }
  func.func @transform_0(%arg0: i32) -> (i32, i32) {
    %c0_i32 = arith.constant 0 : i32
    %c0_i32_0 = arith.constant 0 : i32
    return %arg0, %c0_i32 : i32, i32
  }
  func.func @transform_1(%arg0: i32) -> (i32, i32) {
    %c0_i32 = arith.constant 0 : i32
    %c0_i32_0 = arith.constant 0 : i32
    %c0_i32_1 = arith.constant 0 : i32
    return %c0_i32, %c0_i32_0 : i32, i32
  }
  func.func @transform_2(%arg0: i32) -> (i32, i32) {
    %c0_i32 = arith.constant 0 : i32
    %c0_i32_0 = arith.constant 0 : i32
    %c0_i32_1 = arith.constant 0 : i32
    return %c0_i32, %c0_i32_0 : i32, i32
  }
  func.func @transform_3(%arg0: i32) -> (i32, i32) {
    %c0_i32 = arith.constant 0 : i32
    %c0_i32_0 = arith.constant 0 : i32
    %c0_i32_1 = arith.constant 0 : i32
    return %c0_i32, %c0_i32_0 : i32, i32
  }
  func.func @transform_4(%arg0: i32) -> (i32, i32) {
    %c0_i32 = arith.constant 0 : i32
    %c0_i32_0 = arith.constant 0 : i32
    return %arg0, %c0_i32 : i32, i32
  }
}

</mosaic_0001>

<llo_original>
// kernel: dcnv2_forward.1
$region0: #{dcnv2_forward.1}
  #allocation0 [shape = 'u32[]', space=smem, size = 0x4, offset = 0x4, fixed_abs, tag = 'smem constant byte address 0x4 - core index']
  #allocation1 [shape = 'u32[144,128]{1,0:T(1,128)}', space=vmem, size = 0x12000, scoped, tag = 'internal scratch']
  %s0 = inlined_call_operand.vmem [shape: bf16[512,48], index: 0, kind: input, shape index: {}]
  %s1 = inlined_call_operand.vmem [shape: bf16[48,128], index: 1, kind: input, shape index: {}]
  %s2 = inlined_call_operand.vmem [shape: f32[1,128], index: 2, kind: input, shape index: {}]
  %s3 = inlined_call_operand.vmem [shape: f32[1,128], index: 3, kind: input, shape index: {}]
  %s4 = inlined_call_operand.hbm [shape: f32[512,128], index: 4, kind: output, shape index: {}]
  %s5 = sld [smem:[#allocation0]]
  $region49: #{dcnv2_forward.1} parent=0
    _
  %s7 = ssub.s32 1, %s5
  %s8 = scalar_select 0, %s7, %s5
  $region1: #{dcnv2_forward.1} parent=0
    #allocation2 [shape = 'u8[131072]{0}', space=vmem, size = 0x20000, scoped, tag = 'output window, operand 0']
    #allocation3 [shape = 's32[2]{0}', space=sflag, size = 0x8, scoped, tag = 'scoped memory for dcnv2_forward.1']
    %9 = vsyncpa [#allocation3], 0
    %s10 = scalar_lea.sflag [#allocation3], 1
    %11 = vsyncpa %s10, 0
    loop: start=0, step=1, limit=6
    $region2: #{dcnv2_forward.1} parent=1 // loop_pre_header
      _
    $region3: #{dcnv2_forward.1} parent=1 // loop_header
      %s13 = sphi 0, %s17
      %p14 = scmp.ge.s32.totalorder %s13, 6
      %s23 = sphi 0, %s25
      %s26 = sphi 0, %s23
      %s27 = sphi 0, %s26
      %s43 = sphi 0, %s27
      %s47 = sphi 0, %s47
      %s49 = sphi 0, %s47
      %s50 = sphi 0, %s49
      %s64 = sphi 0, %s50
      %s68 = sphi 0, %s68
      %s70 = sphi 0, %s68
      %s71 = sphi 0, %s70
      %s85 = sphi 0, %s71
      %s89 = sphi 0, %s89
      %s91 = sphi 0, %s89
      %s92 = sphi 0, %s91
      %s106 = sphi 0, %s92
      %s112 = sphi 0, %s114
      %s115 = sphi 0, %s112
      %s116 = sphi 0, %s115
      %s132 = sphi 0, %s116
    $region4: #{dcnv2_forward.1} parent=1 // loop_header_branch
      %16 = sbr.rel (%p14) target = $region8
    $region5: #{dcnv2_forward.1} parent=1 // loop_body
      %s18 = ssub.s32 %s13, 1
      %s19 = ssub.s32 %s13, 2
      %s20 = sadd.s32 %s13, 1
      %s21 = ssub.s32 %s13, %s20
      %p22 = scmp.eq.s32.totalorder %s21, 0
      %s24 = sadd.s32 %s23, 1
      %s25 = scalar_select %p22, %s23, %s24
      %p28 = pneg %p22
      %p29 = scmp.eq.s32.totalorder %s13, 3
      %p30 = por %p28, %p29
      %p31 = scmp.ne.s32.totalorder %s23, %s26
      %p32 = scmp.eq.s32.totalorder %s13, 0
      %p33 = por %p31, %p32
      %p34 = scmp.ne.s32.totalorder %s23, %s26
      %p35 = scmp.eq.s32.totalorder %s18, 3
      %p36 = por %p34, %p35
      %p37 = scmp.ne.s32.totalorder %s26, %s27
      %p38 = scmp.eq.s32.totalorder %s18, 0
      %p39 = por %p37, %p38
      %p40 = scmp.ne.s32.totalorder %s26, %s27
      %p41 = scmp.eq.s32.totalorder %s19, 3
      %p42 = por %p40, %p41
      %p44 = scmp.ne.s32.totalorder %s27, %s43
      %p45 = scmp.eq.s32.totalorder %s19, 0
      %p46 = por %p44, %p45
      %s48 = sadd.s32 %s47, 1
      %p51 = scmp.eq.s32.totalorder %s13, 3
      %p52 = scmp.ne.s32.totalorder %s47, %s49
      %p53 = scmp.eq.s32.totalorder %s13, 0
      %p54 = por %p52, %p53
      %p55 = scmp.ne.s32.totalorder %s47, %s49
      %p56 = scmp.eq.s32.totalorder %s18, 3
      %p57 = por %p55, %p56
      %p58 = scmp.ne.s32.totalorder %s49, %s50
      %p59 = scmp.eq.s32.totalorder %s18, 0
      %p60 = por %p58, %p59
      %p61 = scmp.ne.s32.totalorder %s49, %s50
      %p62 = scmp.eq.s32.totalorder %s19, 3
      %p63 = por %p61, %p62
      %p65 = scmp.ne.s32.totalorder %s50, %s64
      %p66 = scmp.eq.s32.totalorder %s19, 0
      %p67 = por %p65, %p66
      %s69 = sadd.s32 %s68, 1
      %p72 = scmp.eq.s32.totalorder %s13, 3
      %p73 = scmp.ne.s32.totalorder %s68, %s70
      %p74 = scmp.eq.s32.totalorder %s13, 0
      %p75 = por %p73, %p74
      %p76 = scmp.ne.s32.totalorder %s68, %s70
      %p77 = scmp.eq.s32.totalorder %s18, 3
      %p78 = por %p76, %p77
      %p79 = scmp.ne.s32.totalorder %s70, %s71
      %p80 = scmp.eq.s32.totalorder %s18, 0
      %p81 = por %p79, %p80
      %p82 = scmp.ne.s32.totalorder %s70, %s71
      %p83 = scmp.eq.s32.totalorder %s19, 3
      %p84 = por %p82, %p83
      %p86 = scmp.ne.s32.totalorder %s71, %s85
      %p87 = scmp.eq.s32.totalorder %s19, 0
      %p88 = por %p86, %p87
      %s90 = sadd.s32 %s89, 1
      %p93 = scmp.eq.s32.totalorder %s13, 3
      %p94 = scmp.ne.s32.totalorder %s89, %s91
      %p95 = scmp.eq.s32.totalorder %s13, 0
      %p96 = por %p94, %p95
      %p97 = scmp.ne.s32.totalorder %s89, %s91
      %p98 = scmp.eq.s32.totalorder %s18, 3
      %p99 = por %p97, %p98
      %p100 = scmp.ne.s32.totalorder %s91, %s92
      %p101 = scmp.eq.s32.totalorder %s18, 0
      %p102 = por %p100, %p101
      %p103 = scmp.ne.s32.totalorder %s91, %s92
      %p104 = scmp.eq.s32.totalorder %s19, 3
      %p105 = por %p103, %p104
      %p107 = scmp.ne.s32.totalorder %s92, %s106
      %p108 = scmp.eq.s32.totalorder %s19, 0
      %p109 = por %p107, %p108
      %s110 = ssub.s32 %s13, %s20
      %p111 = scmp.eq.s32.totalorder %s110, 0
      %s113 = sadd.s32 %s112, 1
      %s114 = scalar_select %p111, %s112, %s113
      %p117 = pneg %p111
      %p118 = scmp.eq.s32.totalorder %s13, 3
      %p119 = por %p117, %p118
      %p120 = scmp.ne.s32.totalorder %s112, %s115
      %p121 = scmp.eq.s32.totalorder %s13, 0
      %p122 = por %p120, %p121
      %p123 = scmp.ne.s32.totalorder %s112, %s115
      %p124 = scmp.eq.s32.totalorder %s18, 3
      %p125 = por %p123, %p124
      %p126 = scmp.ne.s32.totalorder %s115, %s116
      %p127 = scmp.eq.s32.totalorder %s18, 0
      %p128 = por %p126, %p127
      %p129 = scmp.ne.s32.totalorder %s115, %s116
      %p130 = scmp.eq.s32.totalorder %s19, 3
      %p131 = por %p129, %p130
      %p133 = scmp.ne.s32.totalorder %s116, %s132
      %p134 = scmp.eq.s32.totalorder %s19, 0
      %p135 = por %p133, %p134
      %p136 = scmp.le.s32.totalorder 1, %s13
      %p137 = scmp.lt.s32.totalorder %s13, 5
      %p138 = pnand %p136, %p137
      %p139 = pneg %p138
      // Predicated region
      $region9: #{dcnv2_forward.1} parent=5 // pred_check
        _
      $region10: #{dcnv2_forward.1} parent=5 // pred_check_branch
        %141 = sbr.rel (%p138) target = $region12
      $region11: #{dcnv2_forward.1} parent=5 // pred_region
        %s142 = ssub.s32 %s13, 1
        // Predicated region
        $region13: #{dcnv2_forward.1} parent=11 // pred_check
          %p143 = pneg %p60
        $region14: #{dcnv2_forward.1} parent=11 // pred_check_branch
          %145 = sbr.rel (%p143) target = $region16
        $region15: #{dcnv2_forward.1} parent=11 // pred_region
          _
        $region16: #{dcnv2_forward.1} parent=11 // pred_fallthru
          _
        // Predicated region
        $region17: #{dcnv2_forward.1} parent=11 // pred_check
          %p146 = pneg %p81
        $region18: #{dcnv2_forward.1} parent=11 // pred_check_branch
          %148 = sbr.rel (%p146) target = $region20
        $region19: #{dcnv2_forward.1} parent=11 // pred_region
          _
        $region20: #{dcnv2_forward.1} parent=11 // pred_fallthru
          _
        // Predicated region
        $region21: #{dcnv2_forward.1} parent=11 // pred_check
          %p149 = pneg %p102
        $region22: #{dcnv2_forward.1} parent=11 // pred_check_branch
          %151 = sbr.rel (%p149) target = $region24
        $region23: #{dcnv2_forward.1} parent=11 // pred_region
          _
        $region24: #{dcnv2_forward.1} parent=11 // pred_fallthru
          _
      $region12: #{dcnv2_forward.1} parent=5 // pred_fallthru
        _
      %p152 = scmp.lt.s32.totalorder %s13, 4
      // Predicated region
      $region25: #{dcnv2_forward.1} parent=5 // pred_check
        %p153 = pneg %p152
      $region26: #{dcnv2_forward.1} parent=5 // pred_check_branch
        %155 = sbr.rel (%p153) target = $region28
      $region27: #{dcnv2_forward.1} parent=5 // pred_region
        // Predicated region
        $region29: #{dcnv2_forward.1} parent=27 // pred_check
          %p156 = pneg %p33
        $region30: #{dcnv2_forward.1} parent=27 // pred_check_branch
          %158 = sbr.rel (%p156) target = $region32
        $region31: #{dcnv2_forward.1} parent=27 // pred_region
          %s159 = smul.u32 16, %s13
          %p160 = scmp.lt.s32.totalorder %s159, 63
          %s161 = scalar_select %p160, %s159, 63
          %s162 = smul.addr %s161, 4
          %s163 = scalar_lea.vmem %s0, %s162
          %s164 = smul.u32 16, %s13
        $region32: #{dcnv2_forward.1} parent=27 // pred_fallthru
          _
      $region28: #{dcnv2_forward.1} parent=5 // pred_fallthru
        _
      %p165 = scmp.le.s32.totalorder 1, %s13
      %p166 = scmp.lt.s32.totalorder %s13, 5
      %p167 = pnand %p165, %p166
      %p168 = pneg %p167
      // Predicated region
      $region33: #{dcnv2_forward.1} parent=5 // pred_check
        _
      $region34: #{dcnv2_forward.1} parent=5 // pred_check_branch
        %170 = sbr.rel (%p167) target = $region36
      $region35: #{dcnv2_forward.1} parent=5 // pred_region
        %s171 = ssub.s32 %s13, 1
        %s172 = smul.u32 16, %s18
        %p173 = scmp.lt.s32.totalorder %s172, 63
        %s174 = scalar_select %p173, %s172, 63
        %s175 = smul.addr %s174, 4
        %s176 = scalar_lea.vmem %s0, %s175
        %p177 = pneg %p39
        %p178 = pneg %p36
        %p179 = pneg %p60
        %p180 = pneg %p57
        %p181 = pneg %p81
        %p182 = pneg %p78
        %p183 = pneg %p102
        %p184 = pneg %p99
        %p185 = pneg %p128
        %p186 = pneg %p125
        %s187 = sand.u32 %s115, 1
        %s188 = scalar_lea.sflag [#allocation3], %s187
        %s189 = sand.u32 %s115, 1
        %s190 = smul.addr %s189, 128
        %s191 = scalar_lea.vmem [#allocation2], %s190
        %s192 = smul.u32 16, %s18
        %p193 = scmp.lt.s32.totalorder %s192, 63
        %s194 = scalar_select %p193, %s192, 63
        %s195 = smul.addr %s194, 4
        %s196 = scalar_lea.vmem %s0, %s195
        %s197 = smul.u32 16, %s18
        %s198 = smul.u32 16, %s18
        %v200 = vld [vmem:[%s196] sm:$0xf]
        %v201 = vld [vmem:[%s196 + $0x4] sm:$0xf]
        %v202 = vld [vmem:[%s196 + $0x8] sm:$0xf]
        %v203 = vld [vmem:[%s196 + $0xc] sm:$0xf]
        %v204 = vld [vmem:[%s196 + $0x10] sm:$0xf]
        %v205 = vld [vmem:[%s196 + $0x14] sm:$0xf]
        %v206 = vld [vmem:[%s196 + $0x18] sm:$0xf]
        %v207 = vld [vmem:[%s196 + $0x1c] sm:$0xf]
        %v208 = vld [vmem:[%s196 + $0x20] sm:$0xf]
        %v209 = vld [vmem:[%s196 + $0x24] sm:$0xf]
        %v210 = vld [vmem:[%s196 + $0x28] sm:$0xf]
        %v211 = vld [vmem:[%s196 + $0x2c] sm:$0xf]
        %v212 = vld [vmem:[%s196 + $0x30] sm:$0xf]
        %v213 = vld [vmem:[%s196 + $0x34] sm:$0xf]
        %v214 = vld [vmem:[%s196 + $0x38] sm:$0xf]
        %v215 = vld [vmem:[%s196 + $0x3c] sm:$0xf]
        %v216 = vld [vmem:[%s1] sm:$0xf]
        %v217 = vld [vmem:[%s1 + $0x4] sm:$0xf]
        %v218 = vld [vmem:[%s1 + $0x8] sm:$0xf]
        %v219 = vld [vmem:[%s1 + $0xc] sm:$0xf]
        %v220 = vld [vmem:[%s1 + $0x10] sm:$0xf]
        %v221 = vld [vmem:[%s1 + $0x14] sm:$0xf]
        %v238 = vunpack.c.l.b16 %v200
        %v239 = vunpack.c.l.b16 %v201
        %v240 = vunpack.c.l.b16 %v202
        %v241 = vunpack.c.l.b16 %v203
        %v242 = vunpack.c.l.b16 %v204
        %v243 = vunpack.c.l.b16 %v205
        %v244 = vunpack.c.l.b16 %v206
        %v245 = vunpack.c.l.b16 %v207
        %v246 = vunpack.c.l.b16 %v208
        %v247 = vunpack.c.l.b16 %v209
        %v248 = vunpack.c.l.b16 %v210
        %v249 = vunpack.c.l.b16 %v211
        %v250 = vunpack.c.l.b16 %v212
        %v251 = vunpack.c.l.b16 %v213
        %v252 = vunpack.c.l.b16 %v214
        %v253 = vunpack.c.l.b16 %v215
        %v254 = vpack.c.b16 %v239, %v238
        %v255 = vpack.c.b16 %v241, %v240
        %v256 = vpack.c.b16 %v243, %v242
        %v257 = vpack.c.b16 %v245, %v244
        %v258 = vpack.c.b16 %v247, %v246
        %v259 = vpack.c.b16 %v249, %v248
        %v260 = vpack.c.b16 %v251, %v250
        %v261 = vpack.c.b16 %v253, %v252
        %v268 = vunpack.c.l.b16 %v216
        %v269 = vunpack.c.l.b16 %v217
        %v270 = vunpack.c.l.b16 %v218
        %v271 = vunpack.c.l.b16 %v219
        %v272 = vunpack.c.l.b16 %v220
        %v273 = vunpack.c.l.b16 %v221
        %v274 = vpack.c.b16 %v269, %v268
        %v275 = vpack.c.b16 %v271, %v270
        %v276 = vpack.c.b16 %v273, %v272
        %vm280 = vcmask 392192
        %v282 = vsel %vm280, %v254, 0
        %v285 = vsel %vm280, %v255, 0
        %v288 = vsel %vm280, %v256, 0
        %v291 = vsel %vm280, %v257, 0
        %v294 = vsel %vm280, %v258, 0
        %v297 = vsel %vm280, %v259, 0
        %v300 = vsel %vm280, %v260, 0
        %v303 = vsel %vm280, %v261, 0
        %305 = vmatprep.subr.bf16.mxu0 0
        %306 = vmatpush1.bf16.msra.mxu0 %v274
        %307 = vmatprep.subr.bf16.mxu0 0
        %308 = vmatpush1.bf16.msra.mxu0 %v275
        %309 = vmatprep.subr.bf16.mxu0 0
        %310 = vmatpush1.bf16.msra.mxu0 %v276
        %311 = vmatprep.subr.bf16.mxu0 0
        %312 = vmatpush1.bf16.msra.mxu0 0
        %313 = vmatprep.subr.bf16.mxu0 0
        %314 = vmatpush1.bf16.msra.mxu0 0
        %315 = vmatprep.subr.bf16.mxu0 0
        %316 = vmatpush1.bf16.msra.mxu0 0
        %317 = vmatprep.subr.bf16.mxu0 0
        %318 = vmatpush1.bf16.msra.mxu0 0
        %319 = vmatprep.subr.bf16.mxu0 0
        %320 = vmatpush1.bf16.msra.mxu0 0
        %321 = vmatprep.subr.bf16.mxu0 0
        %322 = vmatpush1.bf16.msra.mxu0 0
        %323 = vmatprep.subr.bf16.mxu0 0
        %324 = vmatpush1.bf16.msra.mxu0 0
        %325 = vmatprep.subr.bf16.mxu0 0
        %326 = vmatpush1.bf16.msra.mxu0 0
        %327 = vmatprep.subr.bf16.mxu0 0
        %328 = vmatpush1.bf16.msra.mxu0 0
        %329 = vmatprep.subr.bf16.mxu0 0
        %330 = vmatpush1.bf16.msra.mxu0 0
        %331 = vmatprep.subr.bf16.mxu0 0
        %332 = vmatpush1.bf16.msra.mxu0 0
        %333 = vmatprep.subr.bf16.mxu0 0
        %334 = vmatpush1.bf16.msra.mxu0 0
        %335 = vmatprep.subr.bf16.mxu0 0
        %336 = vmatpush1.bf16.msra.mxu0 0
        %337 = vmatprep.mubr.bf16.mxu0 0
        %338 = vmatmul.mubr.bf16.gmra.mrb[0].mxu0 %v282
        %v339 = vpop.f32.mrb[0].mxu0
        %v340 = vadd.f32 0.0, %v339
        %v341 = vpop.f32.mrb[0].mxu0
        %v342 = vpop.f32.mrb[0].mxu0
        %v343 = vadd.f32 0.0, %v342
        %v344 = vpop.f32.mrb[0].mxu0
        %345 = vmatprep.mubr.bf16.mxu0 0
        %346 = vmatmul.mubr.bf16.gmra.mrb[0].mxu0 %v285
        %v347 = vpop.f32.mrb[0].mxu0
        %v348 = vadd.f32 0.0, %v347
        %v349 = vpop.f32.mrb[0].mxu0
        %v350 = vpop.f32.mrb[0].mxu0
        %v351 = vadd.f32 0.0, %v350
        %v352 = vpop.f32.mrb[0].mxu0
        %353 = vmatprep.mubr.bf16.mxu0 0
        %354 = vmatmul.mubr.bf16.gmra.mrb[0].mxu0 %v288
        %v355 = vpop.f32.mrb[0].mxu0
        %v356 = vadd.f32 0.0, %v355
        %v357 = vpop.f32.mrb[0].mxu0
        %v358 = vpop.f32.mrb[0].mxu0
        %v359 = vadd.f32 0.0, %v358
        %v360 = vpop.f32.mrb[0].mxu0
        %361 = vmatprep.mubr.bf16.mxu0 0
        %362 = vmatmul.mubr.bf16.gmra.mrb[0].mxu0 %v291
        %v363 = vpop.f32.mrb[0].mxu0
        %v364 = vadd.f32 0.0, %v363
        %v365 = vpop.f32.mrb[0].mxu0
        %v366 = vpop.f32.mrb[0].mxu0
        %v367 = vadd.f32 0.0, %v366
        %v368 = vpop.f32.mrb[0].mxu0
        %369 = vmatprep.mubr.bf16.mxu0 0
        %370 = vmatmul.mubr.bf16.gmra.mrb[0].mxu0 %v294
        %v371 = vpop.f32.mrb[0].mxu0
        %v372 = vadd.f32 0.0, %v371
        %v373 = vpop.f32.mrb[0].mxu0
        %v374 = vpop.f32.mrb[0].mxu0
        %v375 = vadd.f32 0.0, %v374
        %v376 = vpop.f32.mrb[0].mxu0
        %377 = vmatprep.mubr.bf16.mxu0 0
        %378 = vmatmul.mubr.bf16.gmra.mrb[0].mxu0 %v297
        %v379 = vpop.f32.mrb[0].mxu0
        %v380 = vadd.f32 0.0, %v379
        %v381 = vpop.f32.mrb[0].mxu0
        %v382 = vpop.f32.mrb[0].mxu0
        %v383 = vadd.f32 0.0, %v382
        %v384 = vpop.f32.mrb[0].mxu0
        %385 = vmatprep.mubr.bf16.mxu0 0
        %386 = vmatmul.mubr.bf16.gmra.mrb[0].mxu0 %v300
        %v387 = vpop.f32.mrb[0].mxu0
        %v388 = vadd.f32 0.0, %v387
        %v389 = vpop.f32.mrb[0].mxu0
        %v390 = vpop.f32.mrb[0].mxu0
        %v391 = vadd.f32 0.0, %v390
        %v392 = vpop.f32.mrb[0].mxu0
        %393 = vmatprep.mubr.bf16.mxu0 0
        %394 = vmatmul.mubr.bf16.gmra.mrb[0].mxu0 %v303
        %v395 = vpop.f32.mrb[0].mxu0
        %v396 = vadd.f32 0.0, %v395
        %v397 = vpop.f32.mrb[0].mxu0
        %v398 = vpop.f32.mrb[0].mxu0
        %v399 = vadd.f32 0.0, %v398
        %v400 = vpop.f32.mrb[0].mxu0
        %401 = vdwg.mxu0
        %v402 = vld [vmem:[%s2] sm:$0x1]
        %v404 = vlaneseq
        %v405 = vshrl.u32 %v404, 7
        %v406 = vsub.s32 0, %v405
        %v407 = vrot.slane %v402, %v406
        %v409 = vmul.f32 %v340, %v407
        %v410 = vmul.f32 %v343, %v407
        %v411 = vmul.f32 %v348, %v407
        %v412 = vmul.f32 %v351, %v407
        %v413 = vmul.f32 %v356, %v407
        %v414 = vmul.f32 %v359, %v407
        %v415 = vmul.f32 %v364, %v407
        %v416 = vmul.f32 %v367, %v407
        %v417 = vmul.f32 %v372, %v407
        %v418 = vmul.f32 %v375, %v407
        %v419 = vmul.f32 %v380, %v407
        %v420 = vmul.f32 %v383, %v407
        %v421 = vmul.f32 %v388, %v407
        %v422 = vmul.f32 %v391, %v407
        %v423 = vmul.f32 %v396, %v407
        %v424 = vmul.f32 %v399, %v407
        %v425 = vld [vmem:[%s3] sm:$0x1]
        %v427 = vlaneseq
        %v428 = vshrl.u32 %v427, 7
        %v429 = vsub.s32 0, %v428
        %v430 = vrot.slane %v425, %v429
        %v432 = vadd.f32 %v409, %v430
        %v433 = vadd.f32 %v410, %v430
        %v434 = vadd.f32 %v411, %v430
        %v435 = vadd.f32 %v412, %v430
        %v436 = vadd.f32 %v413, %v430
        %v437 = vadd.f32 %v414, %v430
        %v438 = vadd.f32 %v415, %v430
        %v439 = vadd.f32 %v416, %v430
        %v440 = vadd.f32 %v417, %v430
        %v441 = vadd.f32 %v418, %v430
        %v442 = vadd.f32 %v419, %v430
        %v443 = vadd.f32 %v420, %v430
        %v444 = vadd.f32 %v421, %v430
        %v445 = vadd.f32 %v422, %v430
        %v446 = vadd.f32 %v423, %v430
        %v447 = vadd.f32 %v424, %v430
        %v448 = vsub.f32 0.0, %v432
        %v449 = vsub.f32 0.0, %v433
        %v450 = vsub.f32 0.0, %v434
        %v451 = vsub.f32 0.0, %v435
        %v452 = vsub.f32 0.0, %v436
        %v453 = vsub.f32 0.0, %v437
        %v454 = vsub.f32 0.0, %v438
        %v455 = vsub.f32 0.0, %v439
        %v456 = vsub.f32 0.0, %v440
        %v457 = vsub.f32 0.0, %v441
        %v458 = vsub.f32 0.0, %v442
        %v459 = vsub.f32 0.0, %v443
        %v460 = vsub.f32 0.0, %v444
        %v461 = vsub.f32 0.0, %v445
        %v462 = vsub.f32 0.0, %v446
        %v463 = vsub.f32 0.0, %v447
        %v464 = vmul.f32 %v448, 1.442695
        %v465 = vpow.pop %v464
        %v466 = vmul.f32 %v449, 1.442695
        %v467 = vpow.pop %v466
        %v468 = vmul.f32 %v450, 1.442695
        %v469 = vpow.pop %v468
        %v470 = vmul.f32 %v451, 1.442695
        %v471 = vpow.pop %v470
        %v472 = vmul.f32 %v452, 1.442695
        %v473 = vpow.pop %v472
        %v474 = vmul.f32 %v453, 1.442695
        %v475 = vpow.pop %v474
        %v476 = vmul.f32 %v454, 1.442695
        %v477 = vpow.pop %v476
        %v478 = vmul.f32 %v455, 1.442695
        %v479 = vpow.pop %v478
        %v480 = vmul.f32 %v456, 1.442695
        %v481 = vpow.pop %v480
        %v482 = vmul.f32 %v457, 1.442695
        %v483 = vpow.pop %v482
        %v484 = vmul.f32 %v458, 1.442695
        %v485 = vpow.pop %v484
        %v486 = vmul.f32 %v459, 1.442695
        %v487 = vpow.pop %v486
        %v488 = vmul.f32 %v460, 1.442695
        %v489 = vpow.pop %v488
        %v490 = vmul.f32 %v461, 1.442695
        %v491 = vpow.pop %v490
        %v492 = vmul.f32 %v462, 1.442695
        %v493 = vpow.pop %v492
        %v494 = vmul.f32 %v463, 1.442695
        %v495 = vpow.pop %v494
        %v496 = vadd.f32 %v465, 1.0
        %v497 = vadd.f32 %v467, 1.0
        %v498 = vadd.f32 %v469, 1.0
        %v499 = vadd.f32 %v471, 1.0
        %v500 = vadd.f32 %v473, 1.0
        %v501 = vadd.f32 %v475, 1.0
        %v502 = vadd.f32 %v477, 1.0
        %v503 = vadd.f32 %v479, 1.0
        %v504 = vadd.f32 %v481, 1.0
        %v505 = vadd.f32 %v483, 1.0
        %v506 = vadd.f32 %v485, 1.0
        %v507 = vadd.f32 %v487, 1.0
        %v508 = vadd.f32 %v489, 1.0
        %v509 = vadd.f32 %v491, 1.0
        %v510 = vadd.f32 %v493, 1.0
        %v511 = vadd.f32 %v495, 1.0
        %v512 = vrcp.pop %v496
        %v513 = vrcp.pop %v497
        %v514 = vrcp.pop %v498
        %v515 = vrcp.pop %v499
        %v516 = vrcp.pop %v500
        %v517 = vrcp.pop %v501
        %v518 = vrcp.pop %v502
        %v519 = vrcp.pop %v503
        %v520 = vrcp.pop %v504
        %v521 = vrcp.pop %v505
        %v522 = vrcp.pop %v506
        %v523 = vrcp.pop %v507
        %v524 = vrcp.pop %v508
        %v525 = vrcp.pop %v509
        %v526 = vrcp.pop %v510
        %v527 = vrcp.pop %v511
        %v528 = vmul.f32 %v432, %v512
        %v529 = vmul.f32 %v433, %v513
        %v530 = vmul.f32 %v434, %v514
        %v531 = vmul.f32 %v435, %v515
        %v532 = vmul.f32 %v436, %v516
        %v533 = vmul.f32 %v437, %v517
        %v534 = vmul.f32 %v438, %v518
        %v535 = vmul.f32 %v439, %v519
        %v536 = vmul.f32 %v440, %v520
        %v537 = vmul.f32 %v441, %v521
        %v538 = vmul.f32 %v442, %v522
        %v539 = vmul.f32 %v443, %v523
        %v540 = vmul.f32 %v444, %v524
        %v541 = vmul.f32 %v445, %v525
        %v542 = vmul.f32 %v446, %v526
        %v543 = vmul.f32 %v447, %v527
        %544 = vst [vmem:[%s191] sm:$0xff] %v528
        %545 = vst [vmem:[%s191 + $0x8] sm:$0xff] %v529
        %546 = vst [vmem:[%s191 + $0x10] sm:$0xff] %v530
        %547 = vst [vmem:[%s191 + $0x18] sm:$0xff] %v531
        %548 = vst [vmem:[%s191 + $0x20] sm:$0xff] %v532
        %549 = vst [vmem:[%s191 + $0x28] sm:$0xff] %v533
        %550 = vst [vmem:[%s191 + $0x30] sm:$0xff] %v534
        %551 = vst [vmem:[%s191 + $0x38] sm:$0xff] %v535
        %552 = vst [vmem:[%s191 + $0x40] sm:$0xff] %v536
        %553 = vst [vmem:[%s191 + $0x48] sm:$0xff] %v537
        %554 = vst [vmem:[%s191 + $0x50] sm:$0xff] %v538
        %555 = vst [vmem:[%s191 + $0x58] sm:$0xff] %v539
        %556 = vst [vmem:[%s191 + $0x60] sm:$0xff] %v540
        %557 = vst [vmem:[%s191 + $0x68] sm:$0xff] %v541
        %558 = vst [vmem:[%s191 + $0x70] sm:$0xff] %v542
        %559 = vst [vmem:[%s191 + $0x78] sm:$0xff] %v543
        %s560 = sand.u32 %s115, 1
        %s561 = scalar_lea.sflag [#allocation3], %s560
        %s562 = sand.u32 %s115, 1
        %s563 = smul.addr %s562, 128
        %s564 = scalar_lea.vmem [#allocation2], %s563
        // Predicated region
        $region37: #{dcnv2_forward.1} parent=35 // pred_check
          %p565 = pneg %p125
        $region38: #{dcnv2_forward.1} parent=35 // pred_check_branch
          %567 = sbr.rel (%p565) target = $region40
        $region39: #{dcnv2_forward.1} parent=35 // pred_region
          %s568 = smul.u32 16, %s18
          %s570 = ssub.s32 2048, 2048
          %571 = vsyncadd %s561, %s570
          %s572 = smul.addr %s568, 128
          %s573 = scalar_lea.hbm %s4, %s572
          %s574 = sshll.u32 %s564, 4
          %s575 = int_to_ptr.vmem [resolvable:$true] %s574
          %580 = dma.vmem_to_hbm [thread:$0]  %s575, 2048, %s573, %s561, 128, 128, 8
        $region40: #{dcnv2_forward.1} parent=35 // pred_fallthru
          _
      $region36: #{dcnv2_forward.1} parent=5 // pred_fallthru
        _
      %p581 = scmp.le.s32.totalorder 2, %s13
      // Predicated region
      $region41: #{dcnv2_forward.1} parent=5 // pred_check
        %p582 = pneg %p581
      $region42: #{dcnv2_forward.1} parent=5 // pred_check_branch
        %584 = sbr.rel (%p582) target = $region44
      $region43: #{dcnv2_forward.1} parent=5 // pred_region
        %s585 = ssub.s32 %s13, 2
        // Predicated region
        $region45: #{dcnv2_forward.1} parent=43 // pred_check
          %p586 = pneg %p131
        $region46: #{dcnv2_forward.1} parent=43 // pred_check_branch
          %588 = sbr.rel (%p586) target = $region48
        $region47: #{dcnv2_forward.1} parent=43 // pred_region
          %s589 = sand.u32 %s116, 1
          %s590 = scalar_lea.sflag [#allocation3], %s589
          %s591 = sand.u32 %s116, 1
          %s592 = smul.addr %s591, 128
          %s593 = scalar_lea.vmem [#allocation2], %s592
          %594 = dma.done %s590, 2048
        $region48: #{dcnv2_forward.1} parent=43 // pred_fallthru
          _
      $region44: #{dcnv2_forward.1} parent=5 // pred_fallthru
        _
    $region6: #{dcnv2_forward.1} parent=1 // loop_footer
      %s17 = sadd.s32 1, %s13
    $region7: #{dcnv2_forward.1} parent=1 // loop_footer_branch
      %12 = sbr.rel target = $region3
    $region8: #{dcnv2_forward.1} parent=1 // loop_exit
      _
    %595 = vsyncpa [#allocation3], 1
    %s596 = scalar_lea.sflag [#allocation3], 1
    %597 = vsyncpa %s596, 1

</llo_original>
